<compile_context>
chip_gen: v7x
topology: tpu7x:2x2x1
jax: 0.10.0
libtpu: 0.0.40
codegen_flags: <defaults>
</compile_context>

<pallas_src>
import jax
import jax.numpy as jnp
from jax.experimental import pallas as pl
from jax.experimental.pallas import tpu as pltpu

N_STATES = 4      # e.g. CartPole observation size
N_ACTIONS = 2     # e.g. CartPole action count
HIDDEN = 50
HEAD = 25


def _round8(n):
    return ((n + 7) // 8) * 8


def _round_up(n, m):
    return ((n + m - 1) // m) * m


# ----- packed-parameter slab layout (rows sublane-aligned, biases in one lane) -
R_WH = 0                                   # rows [0, 50)   : Wh^T   (50, 4)
R_W1 = _round8(HIDDEN)                     # rows [56, 106) : W1^T   (50, 50)  [a1 | v1]
R_W2 = R_W1 + _round8(2 * HEAD)            # rows [112,115) : W2blk  (3, 50)   block-diag
OUT_ROWS = N_ACTIONS + 1                   # 3: rows 0..N_ACTIONS-1 = adv, row N_ACTIONS = val
W2_SLAB_ROWS = _round8(OUT_ROWS)           # 8 rows reserved in the slab (alignment)
SLAB_ROWS = R_W2 + W2_SLAB_ROWS            # 120
SLAB_COLS = 128
C_BIAS = SLAB_COLS - 8                     # 120: biases live in this lane column


def duelnet_kernel(x_ref, w_ref, out_ref):
    # x_ref: (N_STATES, bb) — batch on lanes, f32 or bf16.  Compute in f32.
    x = x_ref[...].astype(jnp.float32)

    # Shared trunk: h = relu(Wh @ x + bh)                       (50, bb)
    wh = w_ref[R_WH:R_WH + HIDDEN, 0:N_STATES]                  # (50, 4)
    bh = w_ref[R_WH:R_WH + HIDDEN, C_BIAS:C_BIAS + 1]           # (50, 1)
    h = jnp.dot(wh, x, preferred_element_type=jnp.float32) + bh
    h = jnp.maximum(h, 0.0)

    # Fused head layer 1: u = relu(W1 @ h + b1) = [a1 | v1]     (50, bb)
    w1 = w_ref[R_W1:R_W1 + 2 * HEAD, 0:HIDDEN]                  # (50, 50)
    b1 = w_ref[R_W1:R_W1 + 2 * HEAD, C_BIAS:C_BIAS + 1]         # (50, 1)
    u = jnp.dot(w1, h, preferred_element_type=jnp.float32) + b1
    u = jnp.maximum(u, 0.0)

    # Fused head layer 2 (block-diagonal), trimmed to the 3 live rows:
    # rows 0..N_ACTIONS-1 = adv, row N_ACTIONS = val.
    w2 = w_ref[R_W2:R_W2 + OUT_ROWS, 0:2 * HEAD]                # (3, 50)
    b2 = w_ref[R_W2:R_W2 + OUT_ROWS, C_BIAS:C_BIAS + 1]         # (3, 1)
    out_ref[...] = jnp.dot(w2, u, preferred_element_type=jnp.float32) + b2


def _choose_batch_tile(B, block_b):
    """Lane-dense batch tile: multiple of 128, capped at 64K columns (v5e scoped
    VMEM headroom), and kept small enough that batches spanning more than one
    tile yield >= 2 grid steps (so v7x can shard the 'parallel' axis on 2 TCs)."""
    cols = _round_up(max(B, 1), 128)                     # batch rounded to whole lanes
    bb = max(128, (min(block_b, 65536) // 128) * 128)
    bb = min(bb, cols)
    if cols >= 2 * 128:
        half = _round_up(cols // 2, 128)
        bb = min(bb, max(half, 128))
    return bb


def duelnet_forward(x, w_slab, *, block_b=32768, x_dtype=jnp.float32,
                    x_is_transposed=False):
    """DuelNet forward.

    x: (B, N_STATES), or (N_STATES, B) if x_is_transposed=True (preferred for the
       large-B path: avoids an extra XLA transpose pass over x).
    w_slab: packed (SLAB_ROWS, SLAB_COLS) f32 slab from pack_params().
    x_dtype: jnp.float32 (default) or jnp.bfloat16 on v6e/v7x to halve x HBM traffic.
    Returns (B, N_ACTIONS) f32.
    """
    if x_is_transposed:
        x_t = x
        B = x.shape[1]
    else:
        B = x.shape[0]
        x_t = x.T                       # batch-on-lanes layout
    x_t = x_t.astype(x_dtype)

    bb = _choose_batch_tile(B, block_b)
    n_tiles = _round_up(B, bb) // bb    # last block may be partial (masked by Pallas)

    z = pl.pallas_call(
        duelnet_kernel,
        out_shape=jax.ShapeDtypeStruct((OUT_ROWS, B), jnp.float32),
        grid=(n_tiles,),
        in_specs=[
            pl.BlockSpec((N_STATES, bb), lambda i: (0, i)),
            # Constant index_map: the 60 KiB param slab is DMA'd once, VMEM-resident.
            pl.BlockSpec((SLAB_ROWS, SLAB_COLS), lambda i: (0, 0)),
        ],
        out_specs=pl.BlockSpec((OUT_ROWS, bb), lambda i: (0, i)),
        compiler_params=pltpu.CompilerParams(
            dimension_semantics=("parallel",)),
    )(x_t, w_slab)

    # Epilogue in XLA on the trimmed 3-row output: adv.mean() is a single scalar
    # over the whole (B, N_ACTIONS) tensor (matches the PyTorch module, which uses
    # advantage.mean() with no dim), i.e. a cross-tile reduction.
    adv = z[:N_ACTIONS, :].T                 # (B, N_ACTIONS)
    val = z[N_ACTIONS, :][:, None]           # (B, 1)
    return val + adv - jnp.mean(adv)


def init_params(key):
    """Deterministic init mimicking nn.Linear default (U[-1/sqrt(fan_in), +]).

    Weights are (in_features, out_features); biases are (1, out_features).
    """
    def linear(key, fan_in, fan_out):
        kw, kb = jax.random.split(key)
        bound = 1.0 / jnp.sqrt(jnp.float32(fan_in))
        w = jax.random.uniform(kw, (fan_in, fan_out), jnp.float32, -bound, bound)
        b = jax.random.uniform(kb, (1, fan_out), jnp.float32, -bound, bound)
        return w, b

    k1, k2, k3, k4, k5 = jax.random.split(key, 5)
    wh, bh = linear(k1, N_STATES, HIDDEN)
    wa1, ba1 = linear(k2, HIDDEN, HEAD)
    wa2, ba2 = linear(k3, HEAD, N_ACTIONS)
    wv1, bv1 = linear(k4, HIDDEN, HEAD)
    wv2, bv2 = linear(k5, HEAD, 1)
    return (wh, bh, wa1, ba1, wa2, ba2, wv1, bv1, wv2, bv2)


def pack_params(params):
    """Pack all 10 parameters into one padded (SLAB_ROWS, SLAB_COLS) f32 slab."""
    (wh, bh, wa1, ba1, wa2, ba2, wv1, bv1, wv2, bv2) = params
    slab = jnp.zeros((SLAB_ROWS, SLAB_COLS), jnp.float32)

    # Trunk: Wh^T (50, 4) + bh (50, 1)
    slab = slab.at[R_WH:R_WH + HIDDEN, 0:N_STATES].set(wh.T)
    slab = slab.at[R_WH:R_WH + HIDDEN, C_BIAS].set(bh[0])

    # Fused head layer 1: [wa1 | wv1]^T (50, 50) + [ba1 | bv1]^T (50, 1)
    w1 = jnp.concatenate([wa1, wv1], axis=1)          # (50, 50) in (in, out)
    b1 = jnp.concatenate([ba1, bv1], axis=1)          # (1, 50)
    slab = slab.at[R_W1:R_W1 + 2 * HEAD, 0:HIDDEN].set(w1.T)
    slab = slab.at[R_W1:R_W1 + 2 * HEAD, C_BIAS].set(b1[0])

    # Fused head layer 2: block-diagonal; rows >= OUT_ROWS stay zero (unused).
    slab = slab.at[R_W2:R_W2 + N_ACTIONS, 0:HEAD].set(wa2.T)            # adv rows
    slab = slab.at[R_W2 + N_ACTIONS, HEAD:2 * HEAD].set(wv2.T[0])       # val row
    slab = slab.at[R_W2:R_W2 + N_ACTIONS, C_BIAS].set(ba2[0])
    slab = slab.at[R_W2 + N_ACTIONS, C_BIAS].set(bv2[0, 0])
    return slab


def duelnet_reference(x, params):
    """Pure-JAX reference for correctness checking (matches PyTorch module)."""
    (wh, bh, wa1, ba1, wa2, ba2, wv1, bv1, wv2, bv2) = params
    h = jnp.maximum(x @ wh + bh, 0.0)
    adv = jnp.maximum(h @ wa1 + ba1, 0.0) @ wa2 + ba2
    val = jnp.maximum(h @ wv1 + bv1, 0.0) @ wv2 + bv2
    return val + adv - jnp.mean(adv)


if __name__ == "__main__":
    key = jax.random.PRNGKey(0)
    kx, kp = jax.random.split(key)

    params = init_params(kp)
    w_slab = pack_params(params)

    # --- primary small-shape check (batch = 2), f32 ----------------------------
    B = 2
    x = jax.random.normal(kx, (B, N_STATES), jnp.float32)
    out = jax.block_until_ready(duelnet_forward(x, w_slab))
    ref = duelnet_reference(x, params)
    assert out.shape == (B, N_ACTIONS), out.shape
    assert jnp.allclose(out, ref, atol=2e-5, rtol=2e-5), (out, ref)

    # --- multi-tile + partial-last-tile path (exercises the removed pad), f32 --
    B2 = 300
    x2 = jax.random.normal(kx, (B2, N_STATES), jnp.float32)
    out2 = jax.block_until_ready(duelnet_forward(x2, w_slab, block_b=256))
    ref2 = duelnet_reference(x2, params)
    assert out2.shape == (B2, N_ACTIONS), out2.shape
    assert jnp.allclose(out2, ref2, atol=1e-4, rtol=1e-4)

    # --- bf16-input path (v6e/v7x HBM-traffic option), looser tolerance --------
    out3 = jax.block_until_ready(duelnet_forward(x, w_slab, x_dtype=jnp.bfloat16))
    assert jnp.allclose(out3, ref, atol=3e-2, rtol=3e-2)

    print("KERNEL_OK")
</pallas_src>

<mosaic_0001>
module attributes {stable_mosaic.version = 11 : i64} {
  func.func @duelnet_kernel(%arg0: i32, %arg1: memref<4x128xf32, #tpu.memory_space<vmem>>, %arg2: memref<120x128xf32, #tpu.memory_space<vmem>>, %arg3: memref<3x128xf32, #tpu.memory_space<vmem>>) attributes {dimension_semantics = [#tpu.dimension_semantics<parallel>], iteration_bounds = array<i64: 1>, scalar_prefetch = 0 : i64, scratch_operands = 0 : i64, tpu.core_type = #tpu.core_type<tc>, window_params = [{transform_indices = @transform_0, window_bounds = array<i64: 4, 128>}, {pipeline_mode = #tpu.pipeline_mode<synchronous>, transform_indices = @transform_1, window_bounds = array<i64: 120, 128>}, {transform_indices = @transform_2, window_bounds = array<i64: 3, 128>}]} {
    %c0 = arith.constant 0 : index
    %c0_0 = arith.constant 0 : index
    %0 = vector.load %arg1[%c0, %c0_0] : memref<4x128xf32, #tpu.memory_space<vmem>>, vector<4x128xf32>
    %c0_1 = arith.constant 0 : index
    %c0_2 = arith.constant 0 : index
    %1 = vector.load %arg2[%c0_1, %c0_2] : memref<120x128xf32, #tpu.memory_space<vmem>>, vector<50x4xf32>
    %c0_3 = arith.constant 0 : index
    %c120 = arith.constant 120 : index
    %2 = vector.load %arg2[%c0_3, %c120] : memref<120x128xf32, #tpu.memory_space<vmem>>, vector<50x1xf32>
    %cst = arith.constant dense<0.000000e+00> : vector<50x128xf32>
    %3 = tpu.matmul %1, %0, %cst {dimension_numbers = #tpu.dot_dimension_numbers<[1], [0], [0], [1], [0, 0, 1, 1], [], []>} : vector<50x4xf32>, vector<4x128xf32>, vector<50x128xf32> -> vector<50x128xf32>
    %4 = vector.broadcast %2 : vector<50x1xf32> to vector<50x128xf32>
    %5 = arith.addf %3, %4 : vector<50x128xf32>
    %cst_4 = arith.constant 0.000000e+00 : f32
    %6 = vector.broadcast %cst_4 : f32 to vector<50x128xf32>
    %7 = arith.maximumf %5, %6 : vector<50x128xf32>
    %c56 = arith.constant 56 : index
    %c0_5 = arith.constant 0 : index
    %8 = vector.load %arg2[%c56, %c0_5] : memref<120x128xf32, #tpu.memory_space<vmem>>, vector<50x50xf32>
    %c56_6 = arith.constant 56 : index
    %c120_7 = arith.constant 120 : index
    %9 = vector.load %arg2[%c56_6, %c120_7] : memref<120x128xf32, #tpu.memory_space<vmem>>, vector<50x1xf32>
    %cst_8 = arith.constant dense<0.000000e+00> : vector<50x128xf32>
    %10 = tpu.matmul %8, %7, %cst_8 {dimension_numbers = #tpu.dot_dimension_numbers<[1], [0], [0], [1], [0, 0, 1, 1], [], []>} : vector<50x50xf32>, vector<50x128xf32>, vector<50x128xf32> -> vector<50x128xf32>
    %11 = vector.broadcast %9 : vector<50x1xf32> to vector<50x128xf32>
    %12 = arith.addf %10, %11 : vector<50x128xf32>
    %cst_9 = arith.constant 0.000000e+00 : f32
    %13 = vector.broadcast %cst_9 : f32 to vector<50x128xf32>
    %14 = arith.maximumf %12, %13 : vector<50x128xf32>
    %c112 = arith.constant 112 : index
    %c0_10 = arith.constant 0 : index
    %15 = vector.load %arg2[%c112, %c0_10] : memref<120x128xf32, #tpu.memory_space<vmem>>, vector<3x50xf32>
    %c112_11 = arith.constant 112 : index
    %c120_12 = arith.constant 120 : index
    %16 = vector.load %arg2[%c112_11, %c120_12] : memref<120x128xf32, #tpu.memory_space<vmem>>, vector<3x1xf32>
    %cst_13 = arith.constant dense<0.000000e+00> : vector<3x128xf32>
    %17 = tpu.matmul %15, %14, %cst_13 {dimension_numbers = #tpu.dot_dimension_numbers<[1], [0], [0], [1], [0, 0, 1, 1], [], []>} : vector<3x50xf32>, vector<50x128xf32>, vector<3x128xf32> -> vector<3x128xf32>
    %18 = vector.broadcast %16 : vector<3x1xf32> to vector<3x128xf32>
    %19 = arith.addf %17, %18 : vector<3x128xf32>
    %c0_14 = arith.constant 0 : index
    %c0_15 = arith.constant 0 : index
    %20 = vector.load %arg3[%c0_14, %c0_15] : memref<3x128xf32, #tpu.memory_space<vmem>>, vector<3x128xf32>
    tpu.vector_store %arg3[%c0_14, %c0_15], %19 {strides = array<i32>} : memref<3x128xf32, #tpu.memory_space<vmem>>, vector<3x128xf32>,
    return
  }
  func.func @transform_0(%arg0: i32) -> (i32, i32) {
    %c0_i32 = arith.constant 0 : i32
    %c0_i32_0 = arith.constant 0 : i32
    return %c0_i32, %arg0 : i32, i32
  }
  func.func @transform_1(%arg0: i32) -> (i32, i32) {
    %c0_i32 = arith.constant 0 : i32
    %c0_i32_0 = arith.constant 0 : i32
    %c0_i32_1 = arith.constant 0 : i32
    return %c0_i32, %c0_i32_0 : i32, i32
  }
  func.func @transform_2(%arg0: i32) -> (i32, i32) {
    %c0_i32 = arith.constant 0 : i32
    %c0_i32_0 = arith.constant 0 : i32
    return %c0_i32, %arg0 : i32, i32
  }
}

</mosaic_0001>

<llo_original>
// kernel: tpu_custom_call.1
$region0: #{tpu_custom_call.1}
  #allocation0 [shape = 'u32[]', space=smem, size = 0x4, offset = 0x4, fixed_abs, tag = 'smem constant byte address 0x4 - core index']
  #allocation1 [shape = 'u32[144,128]{1,0:T(1,128)}', space=vmem, size = 0x12000, scoped, tag = 'internal scratch']
  %s0 = inlined_call_operand.vmem [shape: f32[4,2], index: 0, kind: input, shape index: {}]
  %s1 = inlined_call_operand.hbm [shape: f32[120,128], index: 1, kind: input, shape index: {}]
  %s2 = inlined_call_operand.vmem [shape: f32[3,2], index: 2, kind: output, shape index: {}]
  %s3 = sld [smem:[#allocation0]]
  $region22: #{tpu_custom_call.1} parent=0
    _
  %s5 = ssub.s32 1, %s3
  %s6 = scalar_select 0, %s5, %s3
  $region1: #{tpu_custom_call.1} parent=0
    #allocation2 [shape = 'u8[61440]{0}', space=vmem, size = 0xf000, scoped, tag = 'input window, operand 1, single buffered']
    #allocation3 [shape = 's32[1]{0}', space=sflag, size = 0x4, scoped, tag = 'scoped memory for tpu_custom_call.1']
    %7 = vsyncpa [#allocation3], 0
    // Predicated region
    $region2: #{tpu_custom_call.1} parent=1 // pred_check
      _
    $region3: #{tpu_custom_call.1} parent=1 // pred_check_branch
      %9 = sbr.rel (0) target = $region5
    $region4: #{tpu_custom_call.1} parent=1 // pred_region
      _
    $region5: #{tpu_custom_call.1} parent=1 // pred_fallthru
      _
    // Predicated region
    $region6: #{tpu_custom_call.1} parent=1 // pred_check
      _
    $region7: #{tpu_custom_call.1} parent=1 // pred_check_branch
      %11 = sbr.rel (0) target = $region9
    $region8: #{tpu_custom_call.1} parent=1 // pred_region
      %s13 = ssub.s32 1920, 1920
      %14 = vsyncadd [#allocation3], %s13
      %s15 = sshll.u32 [#allocation2], 4
      %s16 = int_to_ptr.vmem [resolvable:$true] %s15
      %21 = dma.hbm_to_vmem [thread:$0]  %s1, 1920, %s16, [#allocation3], 128, 128, 8
    $region9: #{tpu_custom_call.1} parent=1 // pred_fallthru
      _
    // Predicated region
    $region10: #{tpu_custom_call.1} parent=1 // pred_check
      _
    $region11: #{tpu_custom_call.1} parent=1 // pred_check_branch
      %23 = sbr.rel (0) target = $region13
    $region12: #{tpu_custom_call.1} parent=1 // pred_region
      %24 = dma.done [#allocation3], 1920
    $region13: #{tpu_custom_call.1} parent=1 // pred_fallthru
      _
    %v25 = vld [vmem:[%s0] sm:$0xf]
    %v26 = vld [vmem:[#allocation2] sm:$0xff]
    %v27 = vld [vmem:[#allocation2 + $0x8] sm:$0xff]
    %v28 = vld [vmem:[#allocation2 + $0x10] sm:$0xff]
    %v29 = vld [vmem:[#allocation2 + $0x18] sm:$0xff]
    %v30 = vld [vmem:[#allocation2 + $0x20] sm:$0xff]
    %v31 = vld [vmem:[#allocation2 + $0x28] sm:$0xff]
    %v32 = vld [vmem:[#allocation2 + $0x30] sm:$0x3]
    %34 = vset.pattern.permute.xlu0 120
    %35 = vperm.xlu0 %34, %v26
    %v36 = vpop.permute.xlu0 %35
    %39 = vset.pattern.permute.xlu0 120
    %40 = vperm.xlu0 %39, %v27
    %v41 = vpop.permute.xlu0 %40
    %44 = vset.pattern.permute.xlu0 120
    %45 = vperm.xlu0 %44, %v28
    %v46 = vpop.permute.xlu0 %45
    %49 = vset.pattern.permute.xlu0 120
    %50 = vperm.xlu0 %49, %v29
    %v51 = vpop.permute.xlu0 %50
    %54 = vset.pattern.permute.xlu0 120
    %55 = vperm.xlu0 %54, %v30
    %v56 = vpop.permute.xlu0 %55
    %59 = vset.pattern.permute.xlu0 120
    %60 = vperm.xlu0 %59, %v31
    %v61 = vpop.permute.xlu0 %60
    %64 = vset.pattern.permute.xlu0 120
    %65 = vperm.xlu0 %64, %v32
    %v66 = vpop.permute.xlu0 %65
    %vm68 = vcmask 31744
    %v69 = vsel %vm68, %v26, 0
    %v71 = vsel %vm68, %v27, 0
    %v73 = vsel %vm68, %v28, 0
    %v75 = vsel %vm68, %v29, 0
    %v77 = vsel %vm68, %v30, 0
    %v79 = vsel %vm68, %v31, 0
    %v81 = vsel %vm68, %v32, 0
    %vm83 = vcmask 1043456
    %v85 = vsel %vm83, %v25, 0
    %87 = vmatprep.subr.mxu0 0.0
    %88 = vmatpush1.msra.mxu0 %v85
    %89 = vmatprep.subr.mxu0 0.0
    %90 = vmatpush1.msra.mxu0 0.0
    %91 = vmatprep.subr.mxu0 0.0
    %92 = vmatpush1.msra.mxu0 0.0
    %93 = vmatprep.subr.mxu0 0.0
    %94 = vmatpush1.msra.mxu0 0.0
    %95 = vmatprep.subr.mxu0 0.0
    %96 = vmatpush1.msra.mxu0 0.0
    %97 = vmatprep.subr.mxu0 0.0
    %98 = vmatpush1.msra.mxu0 0.0
    %99 = vmatprep.subr.mxu0 0.0
    %100 = vmatpush1.msra.mxu0 0.0
    %101 = vmatprep.subr.mxu0 0.0
    %102 = vmatpush1.msra.mxu0 0.0
    %103 = vmatprep.subr.mxu0 0.0
    %104 = vmatpush1.msra.mxu0 0.0
    %105 = vmatprep.subr.mxu0 0.0
    %106 = vmatpush1.msra.mxu0 0.0
    %107 = vmatprep.subr.mxu0 0.0
    %108 = vmatpush1.msra.mxu0 0.0
    %109 = vmatprep.subr.mxu0 0.0
    %110 = vmatpush1.msra.mxu0 0.0
    %111 = vmatprep.subr.mxu0 0.0
    %112 = vmatpush1.msra.mxu0 0.0
    %113 = vmatprep.subr.mxu0 0.0
    %114 = vmatpush1.msra.mxu0 0.0
    %115 = vmatprep.subr.mxu0 0.0
    %116 = vmatpush1.msra.mxu0 0.0
    %117 = vmatprep.subr.mxu0 0.0
    %118 = vmatpush1.msra.mxu0 0.0
    %119 = vmatprep.subr.mxu0 0.0
    %120 = vmatpush1.msra.mxu0 0.0
    %121 = vmatprep.subr.mxu0 0.0
    %122 = vmatpush1.msra.mxu0 0.0
    %123 = vmatprep.subr.mxu0 0.0
    %124 = vmatpush1.msra.mxu0 0.0
    %125 = vmatprep.subr.mxu0 0.0
    %126 = vmatpush1.msra.mxu0 0.0
    %127 = vmatprep.subr.mxu0 0.0
    %128 = vmatpush1.msra.mxu0 0.0
    %129 = vmatprep.subr.mxu0 0.0
    %130 = vmatpush1.msra.mxu0 0.0
    %131 = vmatprep.subr.mxu0 0.0
    %132 = vmatpush1.msra.mxu0 0.0
    %133 = vmatprep.subr.mxu0 0.0
    %134 = vmatpush1.msra.mxu0 0.0
    %135 = vmatprep.subr.mxu0 0.0
    %136 = vmatpush1.msra.mxu0 0.0
    %137 = vmatprep.subr.mxu0 0.0
    %138 = vmatpush1.msra.mxu0 0.0
    %139 = vmatprep.subr.mxu0 0.0
    %140 = vmatpush1.msra.mxu0 0.0
    %141 = vmatprep.subr.mxu0 0.0
    %142 = vmatpush1.msra.mxu0 0.0
    %143 = vmatprep.subr.mxu0 0.0
    %144 = vmatpush1.msra.mxu0 0.0
    %145 = vmatprep.subr.mxu0 0.0
    %146 = vmatpush1.msra.mxu0 0.0
    %147 = vmatprep.subr.mxu0 0.0
    %148 = vmatpush1.msra.mxu0 0.0
    %149 = vmatprep.subr.mxu0 0.0
    %150 = vmatpush1.msra.mxu0 0.0
    %151 = vmatprep.mubr.f32.mxu0 0.0
    %152 = vmatmul.mubr.f32.gmra.mrb[0].mxu0 %v69
    %v153 = vpop.f32.mrb[0].mxu0
    %v154 = vadd.f32 %v36, %v153
    %v155 = vpop.f32.mrb[0].mxu0
    %156 = vmatprep.mubr.f32.mxu0 0.0
    %157 = vmatmul.mubr.f32.gmra.mrb[0].mxu0 %v71
    %v158 = vpop.f32.mrb[0].mxu0
    %v159 = vadd.f32 %v41, %v158
    %v160 = vpop.f32.mrb[0].mxu0
    %161 = vmatprep.mubr.f32.mxu0 0.0
    %162 = vmatmul.mubr.f32.gmra.mrb[0].mxu0 %v73
    %v163 = vpop.f32.mrb[0].mxu0
    %v164 = vadd.f32 %v46, %v163
    %v165 = vpop.f32.mrb[0].mxu0
    %166 = vmatprep.mubr.f32.mxu0 0.0
    %167 = vmatmul.mubr.f32.gmra.mrb[0].mxu0 %v75
    %v168 = vpop.f32.mrb[0].mxu0
    %v169 = vadd.f32 %v51, %v168
    %v170 = vpop.f32.mrb[0].mxu0
    %171 = vmatprep.mubr.f32.mxu0 0.0
    %172 = vmatmul.mubr.f32.gmra.mrb[0].mxu0 %v77
    %v173 = vpop.f32.mrb[0].mxu0
    %v174 = vadd.f32 %v56, %v173
    %v175 = vpop.f32.mrb[0].mxu0
    %176 = vmatprep.mubr.f32.mxu0 0.0
    %177 = vmatmul.mubr.f32.gmra.mrb[0].mxu0 %v79
    %v178 = vpop.f32.mrb[0].mxu0
    %v179 = vadd.f32 %v61, %v178
    %v180 = vpop.f32.mrb[0].mxu0
    %181 = vmatprep.mubr.f32.mxu0 0.0
    %182 = vmatmul.mubr.f32.gmra.mrb[0].mxu0 %v81
    %v183 = vpop.f32.mrb[0].mxu0
    %v184 = vadd.f32 %v66, %v183
    %v185 = vpop.f32.mrb[0].mxu0
    %186 = vdwg.mxu0
    %v187 = vmax.f32 %v154, 0.0
    %v188 = vmax.f32 %v159, 0.0
    %v189 = vmax.f32 %v164, 0.0
    %v190 = vmax.f32 %v169, 0.0
    %v191 = vmax.f32 %v174, 0.0
    %v192 = vmax.f32 %v179, 0.0
    %v193 = vmax.f32 %v184, 0.0
    %v194 = vld [vmem:[#allocation2 + $0x38] sm:$0xff]
    %v195 = vld [vmem:[#allocation2 + $0x40] sm:$0xff]
    %v196 = vld [vmem:[#allocation2 + $0x48] sm:$0xff]
    %v197 = vld [vmem:[#allocation2 + $0x50] sm:$0xff]
    %v198 = vld [vmem:[#allocation2 + $0x58] sm:$0xff]
    %v199 = vld [vmem:[#allocation2 + $0x60] sm:$0xff]
    %v200 = vld [vmem:[#allocation2 + $0x68] sm:$0x3]
    %202 = vset.pattern.permute.xlu0 120
    %203 = vperm.xlu0 %202, %v194
    %v204 = vpop.permute.xlu0 %203
    %207 = vset.pattern.permute.xlu0 120
    %208 = vperm.xlu0 %207, %v195
    %v209 = vpop.permute.xlu0 %208
    %212 = vset.pattern.permute.xlu0 120
    %213 = vperm.xlu0 %212, %v196
    %v214 = vpop.permute.xlu0 %213
    %217 = vset.pattern.permute.xlu0 120
    %218 = vperm.xlu0 %217, %v197
    %v219 = vpop.permute.xlu0 %218
    %222 = vset.pattern.permute.xlu0 120
    %223 = vperm.xlu0 %222, %v198
    %v224 = vpop.permute.xlu0 %223
    %227 = vset.pattern.permute.xlu0 120
    %228 = vperm.xlu0 %227, %v199
    %v229 = vpop.permute.xlu0 %228
    %232 = vset.pattern.permute.xlu0 120
    %233 = vperm.xlu0 %232, %v200
    %v234 = vpop.permute.xlu0 %233
    %vm236 = vcmask 408576
    %v237 = vsel %vm236, %v194, 0
    %v239 = vsel %vm236, %v195, 0
    %v241 = vsel %vm236, %v196, 0
    %v243 = vsel %vm236, %v197, 0
    %v245 = vsel %vm236, %v198, 0
    %v247 = vsel %vm236, %v199, 0
    %v249 = vsel %vm236, %v200, 0
    %vm251 = vcmask 1041408
    %v253 = vsel %vm251, %v193, 0
    %255 = vmatprep.subr.mxu0 0.0
    %256 = vmatpush1.msra.mxu0 %v187
    %257 = vmatprep.subr.mxu0 0.0
    %258 = vmatpush1.msra.mxu0 %v188
    %259 = vmatprep.subr.mxu0 0.0
    %260 = vmatpush1.msra.mxu0 %v189
    %261 = vmatprep.subr.mxu0 0.0
    %262 = vmatpush1.msra.mxu0 %v190
    %263 = vmatprep.subr.mxu0 0.0
    %264 = vmatpush1.msra.mxu0 %v191
    %265 = vmatprep.subr.mxu0 0.0
    %266 = vmatpush1.msra.mxu0 %v192
    %267 = vmatprep.subr.mxu0 0.0
    %268 = vmatpush1.msra.mxu0 %v253
    %269 = vmatprep.subr.mxu0 0.0
    %270 = vmatpush1.msra.mxu0 0.0
    %271 = vmatprep.subr.mxu0 0.0
    %272 = vmatpush1.msra.mxu0 0.0
    %273 = vmatprep.subr.mxu0 0.0
    %274 = vmatpush1.msra.mxu0 0.0
    %275 = vmatprep.subr.mxu0 0.0
    %276 = vmatpush1.msra.mxu0 0.0
    %277 = vmatprep.subr.mxu0 0.0
    %278 = vmatpush1.msra.mxu0 0.0
    %279 = vmatprep.subr.mxu0 0.0
    %280 = vmatpush1.msra.mxu0 0.0
    %281 = vmatprep.subr.mxu0 0.0
    %282 = vmatpush1.msra.mxu0 0.0
    %283 = vmatprep.subr.mxu0 0.0
    %284 = vmatpush1.msra.mxu0 0.0
    %285 = vmatprep.subr.mxu0 0.0
    %286 = vmatpush1.msra.mxu0 0.0
    %287 = vmatprep.subr.mxu0 0.0
    %288 = vmatpush1.msra.mxu0 0.0
    %289 = vmatprep.subr.mxu0 0.0
    %290 = vmatpush1.msra.mxu0 0.0
    %291 = vmatprep.subr.mxu0 0.0
    %292 = vmatpush1.msra.mxu0 0.0
    %293 = vmatprep.subr.mxu0 0.0
    %294 = vmatpush1.msra.mxu0 0.0
    %295 = vmatprep.subr.mxu0 0.0
    %296 = vmatpush1.msra.mxu0 0.0
    %297 = vmatprep.subr.mxu0 0.0
    %298 = vmatpush1.msra.mxu0 0.0
    %299 = vmatprep.subr.mxu0 0.0
    %300 = vmatpush1.msra.mxu0 0.0
    %301 = vmatprep.subr.mxu0 0.0
    %302 = vmatpush1.msra.mxu0 0.0
    %303 = vmatprep.subr.mxu0 0.0
    %304 = vmatpush1.msra.mxu0 0.0
    %305 = vmatprep.subr.mxu0 0.0
    %306 = vmatpush1.msra.mxu0 0.0
    %307 = vmatprep.subr.mxu0 0.0
    %308 = vmatpush1.msra.mxu0 0.0
    %309 = vmatprep.subr.mxu0 0.0
    %310 = vmatpush1.msra.mxu0 0.0
    %311 = vmatprep.subr.mxu0 0.0
    %312 = vmatpush1.msra.mxu0 0.0
    %313 = vmatprep.subr.mxu0 0.0
    %314 = vmatpush1.msra.mxu0 0.0
    %315 = vmatprep.subr.mxu0 0.0
    %316 = vmatpush1.msra.mxu0 0.0
    %317 = vmatprep.subr.mxu0 0.0
    %318 = vmatpush1.msra.mxu0 0.0
    %319 = vmatprep.mubr.f32.mxu0 0.0
    %320 = vmatmul.mubr.f32.gmra.mrb[0].mxu0 %v237
    %v321 = vpop.f32.mrb[0].mxu0
    %v322 = vadd.f32 %v204, %v321
    %v323 = vpop.f32.mrb[0].mxu0
    %324 = vmatprep.mubr.f32.mxu0 0.0
    %325 = vmatmul.mubr.f32.gmra.mrb[0].mxu0 %v239
    %v326 = vpop.f32.mrb[0].mxu0
    %v327 = vadd.f32 %v209, %v326
    %v328 = vpop.f32.mrb[0].mxu0
    %329 = vmatprep.mubr.f32.mxu0 0.0
    %330 = vmatmul.mubr.f32.gmra.mrb[0].mxu0 %v241
    %v331 = vpop.f32.mrb[0].mxu0
    %v332 = vadd.f32 %v214, %v331
    %v333 = vpop.f32.mrb[0].mxu0
    %334 = vmatprep.mubr.f32.mxu0 0.0
    %335 = vmatmul.mubr.f32.gmra.mrb[0].mxu0 %v243
    %v336 = vpop.f32.mrb[0].mxu0
    %v337 = vadd.f32 %v219, %v336
    %v338 = vpop.f32.mrb[0].mxu0
    %339 = vmatprep.mubr.f32.mxu0 0.0
    %340 = vmatmul.mubr.f32.gmra.mrb[0].mxu0 %v245
    %v341 = vpop.f32.mrb[0].mxu0
    %v342 = vadd.f32 %v224, %v341
    %v343 = vpop.f32.mrb[0].mxu0
    %344 = vmatprep.mubr.f32.mxu0 0.0
    %345 = vmatmul.mubr.f32.gmra.mrb[0].mxu0 %v247
    %v346 = vpop.f32.mrb[0].mxu0
    %v347 = vadd.f32 %v229, %v346
    %v348 = vpop.f32.mrb[0].mxu0
    %349 = vmatprep.mubr.f32.mxu0 0.0
    %350 = vmatmul.mubr.f32.gmra.mrb[0].mxu0 %v249
    %v351 = vpop.f32.mrb[0].mxu0
    %v352 = vadd.f32 %v234, %v351
    %v353 = vpop.f32.mrb[0].mxu0
    %354 = vdwg.mxu0
    %v355 = vmax.f32 %v322, 0.0
    %v356 = vmax.f32 %v327, 0.0
    %v357 = vmax.f32 %v332, 0.0
    %v358 = vmax.f32 %v337, 0.0
    %v359 = vmax.f32 %v342, 0.0
    %v360 = vmax.f32 %v347, 0.0
    %v361 = vmax.f32 %v352, 0.0
    %v362 = vld [vmem:[#allocation2 + $0x70] sm:$0x7]
    %364 = vset.pattern.permute.xlu0 120
    %365 = vperm.xlu0 %364, %v362
    %v366 = vpop.permute.xlu0 %365
    %v368 = vsel %vm236, %v362, 0
    %v371 = vsel %vm251, %v361, 0
    %373 = vmatprep.subr.mxu0 0.0
    %374 = vmatpush1.msra.mxu0 %v355
    %375 = vmatprep.subr.mxu0 0.0
    %376 = vmatpush1.msra.mxu0 %v356
    %377 = vmatprep.subr.mxu0 0.0
    %378 = vmatpush1.msra.mxu0 %v357
    %379 = vmatprep.subr.mxu0 0.0
    %380 = vmatpush1.msra.mxu0 %v358
    %381 = vmatprep.subr.mxu0 0.0
    %382 = vmatpush1.msra.mxu0 %v359
    %383 = vmatprep.subr.mxu0 0.0
    %384 = vmatpush1.msra.mxu0 %v360
    %385 = vmatprep.subr.mxu0 0.0
    %386 = vmatpush1.msra.mxu0 %v371
    %387 = vmatprep.subr.mxu0 0.0
    %388 = vmatpush1.msra.mxu0 0.0
    %389 = vmatprep.subr.mxu0 0.0
    %390 = vmatpush1.msra.mxu0 0.0
    %391 = vmatprep.subr.mxu0 0.0
    %392 = vmatpush1.msra.mxu0 0.0
    %393 = vmatprep.subr.mxu0 0.0
    %394 = vmatpush1.msra.mxu0 0.0
    %395 = vmatprep.subr.mxu0 0.0
    %396 = vmatpush1.msra.mxu0 0.0
    %397 = vmatprep.subr.mxu0 0.0
    %398 = vmatpush1.msra.mxu0 0.0
    %399 = vmatprep.subr.mxu0 0.0
    %400 = vmatpush1.msra.mxu0 0.0
    %401 = vmatprep.subr.mxu0 0.0
    %402 = vmatpush1.msra.mxu0 0.0
    %403 = vmatprep.subr.mxu0 0.0
    %404 = vmatpush1.msra.mxu0 0.0
    %405 = vmatprep.subr.mxu0 0.0
    %406 = vmatpush1.msra.mxu0 0.0
    %407 = vmatprep.subr.mxu0 0.0
    %408 = vmatpush1.msra.mxu0 0.0
    %409 = vmatprep.subr.mxu0 0.0
    %410 = vmatpush1.msra.mxu0 0.0
    %411 = vmatprep.subr.mxu0 0.0
    %412 = vmatpush1.msra.mxu0 0.0
    %413 = vmatprep.subr.mxu0 0.0
    %414 = vmatpush1.msra.mxu0 0.0
    %415 = vmatprep.subr.mxu0 0.0
    %416 = vmatpush1.msra.mxu0 0.0
    %417 = vmatprep.subr.mxu0 0.0
    %418 = vmatpush1.msra.mxu0 0.0
    %419 = vmatprep.subr.mxu0 0.0
    %420 = vmatpush1.msra.mxu0 0.0
    %421 = vmatprep.subr.mxu0 0.0
    %422 = vmatpush1.msra.mxu0 0.0
    %423 = vmatprep.subr.mxu0 0.0
    %424 = vmatpush1.msra.mxu0 0.0
    %425 = vmatprep.subr.mxu0 0.0
    %426 = vmatpush1.msra.mxu0 0.0
    %427 = vmatprep.subr.mxu0 0.0
    %428 = vmatpush1.msra.mxu0 0.0
    %429 = vmatprep.subr.mxu0 0.0
    %430 = vmatpush1.msra.mxu0 0.0
    %431 = vmatprep.subr.mxu0 0.0
    %432 = vmatpush1.msra.mxu0 0.0
    %433 = vmatprep.subr.mxu0 0.0
    %434 = vmatpush1.msra.mxu0 0.0
    %435 = vmatprep.subr.mxu0 0.0
    %436 = vmatpush1.msra.mxu0 0.0
    %437 = vmatprep.mubr.f32.mxu0 0.0
    %438 = vmatmul.mubr.f32.gmra.mrb[0].mxu0 %v368
    %v439 = vpop.f32.mrb[0].mxu0
    %v440 = vadd.f32 %v366, %v439
    %v441 = vpop.f32.mrb[0].mxu0
    %442 = vdwg.mxu0
    %443 = vst [vmem:[%s2] sm:$0x7] %v440
    // Predicated region
    $region14: #{tpu_custom_call.1} parent=1 // pred_check
      _
    $region15: #{tpu_custom_call.1} parent=1 // pred_check_branch
      %445 = sbr.rel (0) target = $region17
    $region16: #{tpu_custom_call.1} parent=1 // pred_region
      _
    $region17: #{tpu_custom_call.1} parent=1 // pred_fallthru
      _
    // Predicated region
    $region18: #{tpu_custom_call.1} parent=1 // pred_check
      _
    $region19: #{tpu_custom_call.1} parent=1 // pred_check_branch
      %447 = sbr.rel (0) target = $region21
    $region20: #{tpu_custom_call.1} parent=1 // pred_region
      _
    $region21: #{tpu_custom_call.1} parent=1 // pred_fallthru
      _
    %448 = vsyncpa [#allocation3], 1

</llo_original>
